<compile_context>
chip_gen: v5e
topology: v5e:2x2
jax: 0.10.0
libtpu: 0.0.40
codegen_flags: <defaults>
</compile_context>

<pallas_src>
import jax
import jax.numpy as jnp
from jax.experimental import pallas as pl
from jax.experimental.pallas import tpu as pltpu


def _round_up(x, m):
    return ((x + m - 1) // m) * m


def _qvalue_kernel(s_ref, g_ref, w1s_ref, w1g_ref, b1_ref, w2_ref, b2_ref, out_ref):
    # Cast activations to bf16 in-kernel (inputs arrive as f32 straight from HBM).
    s = s_ref[...].astype(jnp.bfloat16)
    g = g_ref[...].astype(jnp.bfloat16)
    # Hidden layer: h = states @ W1_s + goals @ W1_g + b1   (bf16 MXU, f32 acc)
    h = jnp.dot(s, w1s_ref[...], preferred_element_type=jnp.float32)
    h = h + jnp.dot(g, w1g_ref[...], preferred_element_type=jnp.float32)
    h = jnp.maximum(h + b1_ref[...], 0.0)                 # bias + ReLU in f32
    # Output layer: q = h @ W2 + b2  (cast h back to bf16 for the MXU)
    q = jnp.dot(h.astype(jnp.bfloat16), w2_ref[...],
                preferred_element_type=jnp.float32)
    out_ref[...] = (q + b2_ref[...]).astype(out_ref.dtype)


def prepare_params(params, state_dim):
    """One-time (per parameter set) layout prep: W1 split (no runtime concat),
    bf16 weights for the MXU, W2/b2 zero-padded to a 128-lane multiple."""
    w1, b1, w2, b2 = params["w1"], params["b1"], params["w2"], params["b2"]
    hidden = w1.shape[1]
    n_out = w2.shape[1]
    n_out_p = _round_up(max(n_out, 1), 128)
    w2_p = jnp.zeros((hidden, n_out_p), jnp.bfloat16).at[:, :n_out].set(
        w2.astype(jnp.bfloat16))
    b2_p = jnp.zeros((1, n_out_p), jnp.float32).at[:, :n_out].set(
        b2.reshape(1, n_out).astype(jnp.float32))
    return {
        "w1_s": w1[:state_dim].astype(jnp.bfloat16),   # (S, hidden)
        "w1_g": w1[state_dim:].astype(jnp.bfloat16),   # (G, hidden)
        "b1": b1.reshape(1, hidden).astype(jnp.float32),
        "w2": w2_p,                                    # (hidden, n_out_p) bf16
        "b2": b2_p,                                    # (1, n_out_p) f32
        "n_out": int(n_out),
    }


def q_value_forward(states, goals, prepped, *, batch_tile=2048):
    """states: (B, S) f32, goals: (B, G) f32 -> (B, n_outputs) f32."""
    B, S = states.shape
    G = goals.shape[1]
    hidden = prepped["w1_s"].shape[1]
    n_out = prepped["n_out"]
    n_out_p = prepped["w2"].shape[1]

    if B == 0:
        return jnp.zeros((0, n_out), jnp.float32)

    # Batch tile: multiple of 16 sublanes (bf16 packing), capped at batch_tile.
    tb = min(batch_tile, _round_up(B, 16))
    # Ensure >=2 grid steps for moderate B so the "parallel" axis spans both
    # TensorCores on v7x (no-op when B is tiny or when B >> batch_tile).
    if B >= 32:
        tb = min(tb, _round_up(pl.cdiv(B, 2), 16))
    grid = (pl.cdiv(B, tb),)   # ragged last block handled by Pallas masking

    out = pl.pallas_call(
        _qvalue_kernel,
        out_shape=jax.ShapeDtypeStruct((B, n_out_p), jnp.float32),
        grid=grid,
        in_specs=[
            pl.BlockSpec((tb, S), lambda i: (i, 0)),           # states tile (f32)
            pl.BlockSpec((tb, G), lambda i: (i, 0)),           # goals tile (f32)
            pl.BlockSpec((S, hidden), lambda i: (0, 0)),       # W1_s (resident)
            pl.BlockSpec((G, hidden), lambda i: (0, 0)),       # W1_g (resident)
            pl.BlockSpec((1, hidden), lambda i: (0, 0)),       # b1
            pl.BlockSpec((hidden, n_out_p), lambda i: (0, 0)), # W2 (resident)
            pl.BlockSpec((1, n_out_p), lambda i: (0, 0)),      # b2
        ],
        out_specs=pl.BlockSpec((tb, n_out_p), lambda i: (i, 0)),
        compiler_params=pltpu.CompilerParams(
            dimension_semantics=("parallel",)),  # megacore on v7x; no-op v5e/v6e
    )(states, goals, prepped["w1_s"], prepped["w1_g"], prepped["b1"],
      prepped["w2"], prepped["b2"])

    # Only the cheap lane slice remains (no batch-pad slice); it usually fuses
    # into the consumer.
    return out[:, :n_out]


def init_params(key, n_inputs, n_outputs, hidden=256):
    """Deterministic init mirroring Q_value.__init__ (zero biases,
    xavier-uniform output weight). Stored f32; prepare_params casts to bf16."""
    k1, k2 = jax.random.split(key)
    # hidden layer: PyTorch Linear default ~ U(-1/sqrt(fan_in), 1/sqrt(fan_in))
    bound1 = 1.0 / jnp.sqrt(jnp.float32(n_inputs))
    w1 = jax.random.uniform(k1, (n_inputs, hidden), jnp.float32, -bound1, bound1)
    b1 = jnp.zeros((1, hidden), jnp.float32)
    # output layer: xavier_uniform_ => U(-sqrt(6/(fan_in+fan_out)), +...)
    bound2 = jnp.sqrt(6.0 / jnp.float32(hidden + n_outputs))
    w2 = jax.random.uniform(k2, (hidden, n_outputs), jnp.float32, -bound2, bound2)
    b2 = jnp.zeros((1, n_outputs), jnp.float32)
    return {"w1": w1, "b1": b1, "w2": w2, "b2": b2}


if __name__ == "__main__":
    key = jax.random.PRNGKey(0)
    k_s, k_g, k_p = jax.random.split(key, 3)

    batch = 2
    state_dim, goal_dim = 20, 12           # n_inputs = 32
    n_outputs = 8

    states = jax.random.normal(k_s, (batch, state_dim), jnp.float32)
    goals = jax.random.normal(k_g, (batch, goal_dim), jnp.float32)
    params = init_params(k_p, state_dim + goal_dim, n_outputs)
    prepped = prepare_params(params, state_dim)     # one-time weight prep

    q = q_value_forward(states, goals, prepped)
    jax.block_until_ready(q)

    # Reference 1: exact PyTorch-semantics f32 path (loose tol: kernel uses bf16 MXU).
    x = jnp.concatenate([states, goals], axis=-1)
    h = jnp.maximum(x @ params["w1"] + params["b1"], 0.0)
    q_f32 = h @ params["w2"] + params["b2"]

    # Reference 2: same bf16 casts as the kernel (tight tol).
    S = state_dim
    hb = jnp.maximum(
        jnp.dot(states.astype(jnp.bfloat16), params["w1"][:S].astype(jnp.bfloat16),
                preferred_element_type=jnp.float32)
        + jnp.dot(goals.astype(jnp.bfloat16), params["w1"][S:].astype(jnp.bfloat16),
                  preferred_element_type=jnp.float32)
        + params["b1"], 0.0)
    q_bf16 = jnp.dot(hb.astype(jnp.bfloat16), params["w2"].astype(jnp.bfloat16),
                     preferred_element_type=jnp.float32) + params["b2"]

    assert q.shape == (batch, n_outputs)
    assert jnp.allclose(q, q_bf16, atol=1e-3, rtol=1e-3)
    assert jnp.allclose(q, q_f32, atol=5e-2, rtol=5e-2)

    print("KERNEL_OK")
</pallas_src>

<mosaic_0001>
module attributes {stable_mosaic.version = 11 : i64} {
  func.func @_qvalue_kernel(%arg0: i32, %arg1: memref<16x20xf32, #tpu.memory_space<vmem>>, %arg2: memref<16x12xf32, #tpu.memory_space<vmem>>, %arg3: memref<20x256xbf16, #tpu.memory_space<vmem>>, %arg4: memref<12x256xbf16, #tpu.memory_space<vmem>>, %arg5: memref<1x256xf32, #tpu.memory_space<vmem>>, %arg6: memref<256x128xbf16, #tpu.memory_space<vmem>>, %arg7: memref<1x128xf32, #tpu.memory_space<vmem>>, %arg8: memref<16x128xf32, #tpu.memory_space<vmem>>) attributes {dimension_semantics = [#tpu.dimension_semantics<parallel>], iteration_bounds = array<i64: 1>, scalar_prefetch = 0 : i64, scratch_operands = 0 : i64, tpu.core_type = #tpu.core_type<tc>, window_params = [{transform_indices = @transform_0, window_bounds = array<i64: 16, 20>}, {transform_indices = @transform_1, window_bounds = array<i64: 16, 12>}, {pipeline_mode = #tpu.pipeline_mode<synchronous>, transform_indices = @transform_2, window_bounds = array<i64: 20, 256>}, {pipeline_mode = #tpu.pipeline_mode<synchronous>, transform_indices = @transform_3, window_bounds = array<i64: 12, 256>}, {pipeline_mode = #tpu.pipeline_mode<synchronous>, transform_indices = @transform_4, window_bounds = array<i64: 1, 256>}, {pipeline_mode = #tpu.pipeline_mode<synchronous>, transform_indices = @transform_5, window_bounds = array<i64: 256, 128>}, {pipeline_mode = #tpu.pipeline_mode<synchronous>, transform_indices = @transform_6, window_bounds = array<i64: 1, 128>}, {transform_indices = @transform_7, window_bounds = array<i64: 16, 128>}]} {
    %c0 = arith.constant 0 : index
    %c0_0 = arith.constant 0 : index
    %0 = vector.load %arg1[%c0, %c0_0] : memref<16x20xf32, #tpu.memory_space<vmem>>, vector<16x20xf32>
    %1 = arith.truncf %0 : vector<16x20xf32> to vector<16x20xbf16>
    %c0_1 = arith.constant 0 : index
    %c0_2 = arith.constant 0 : index
    %2 = vector.load %arg2[%c0_1, %c0_2] : memref<16x12xf32, #tpu.memory_space<vmem>>, vector<16x12xf32>
    %3 = arith.truncf %2 : vector<16x12xf32> to vector<16x12xbf16>
    %c0_3 = arith.constant 0 : index
    %c0_4 = arith.constant 0 : index
    %4 = vector.load %arg3[%c0_3, %c0_4] : memref<20x256xbf16, #tpu.memory_space<vmem>>, vector<20x256xbf16>
    %cst = arith.constant dense<0.000000e+00> : vector<16x256xf32>
    %5 = tpu.matmul %1, %4, %cst {dimension_numbers = #tpu.dot_dimension_numbers<[1], [0], [0], [1], [0, 0, 1, 1], [], []>} : vector<16x20xbf16>, vector<20x256xbf16>, vector<16x256xf32> -> vector<16x256xf32>
    %c0_5 = arith.constant 0 : index
    %c0_6 = arith.constant 0 : index
    %6 = vector.load %arg4[%c0_5, %c0_6] : memref<12x256xbf16, #tpu.memory_space<vmem>>, vector<12x256xbf16>
    %cst_7 = arith.constant dense<0.000000e+00> : vector<16x256xf32>
    %7 = tpu.matmul %3, %6, %cst_7 {dimension_numbers = #tpu.dot_dimension_numbers<[1], [0], [0], [1], [0, 0, 1, 1], [], []>} : vector<16x12xbf16>, vector<12x256xbf16>, vector<16x256xf32> -> vector<16x256xf32>
    %8 = arith.addf %5, %7 : vector<16x256xf32>
    %c0_8 = arith.constant 0 : index
    %c0_9 = arith.constant 0 : index
    %9 = vector.load %arg5[%c0_8, %c0_9] : memref<1x256xf32, #tpu.memory_space<vmem>>, vector<1x256xf32>
    %10 = vector.broadcast %9 : vector<1x256xf32> to vector<16x256xf32>
    %11 = arith.addf %8, %10 : vector<16x256xf32>
    %cst_10 = arith.constant 0.000000e+00 : f32
    %12 = vector.broadcast %cst_10 : f32 to vector<16x256xf32>
    %13 = arith.maximumf %11, %12 : vector<16x256xf32>
    %14 = arith.truncf %13 : vector<16x256xf32> to vector<16x256xbf16>
    %c0_11 = arith.constant 0 : index
    %c0_12 = arith.constant 0 : index
    %15 = vector.load %arg6[%c0_11, %c0_12] : memref<256x128xbf16, #tpu.memory_space<vmem>>, vector<256x128xbf16>
    %cst_13 = arith.constant dense<0.000000e+00> : vector<16x128xf32>
    %16 = tpu.matmul %14, %15, %cst_13 {dimension_numbers = #tpu.dot_dimension_numbers<[1], [0], [0], [1], [0, 0, 1, 1], [], []>} : vector<16x256xbf16>, vector<256x128xbf16>, vector<16x128xf32> -> vector<16x128xf32>
    %c0_14 = arith.constant 0 : index
    %c0_15 = arith.constant 0 : index
    %17 = vector.load %arg7[%c0_14, %c0_15] : memref<1x128xf32, #tpu.memory_space<vmem>>, vector<1x128xf32>
    %18 = vector.broadcast %17 : vector<1x128xf32> to vector<16x128xf32>
    %19 = arith.addf %16, %18 : vector<16x128xf32>
    %c0_16 = arith.constant 0 : index
    %c0_17 = arith.constant 0 : index
    %20 = vector.load %arg8[%c0_16, %c0_17] : memref<16x128xf32, #tpu.memory_space<vmem>>, vector<16x128xf32>
    tpu.vector_store %arg8[%c0_16, %c0_17], %19 {strides = array<i32>} : memref<16x128xf32, #tpu.memory_space<vmem>>, vector<16x128xf32>,
    return
  }
  func.func @transform_0(%arg0: i32) -> (i32, i32) {
    %c0_i32 = arith.constant 0 : i32
    %c0_i32_0 = arith.constant 0 : i32
    return %arg0, %c0_i32 : i32, i32
  }
  func.func @transform_1(%arg0: i32) -> (i32, i32) {
    %c0_i32 = arith.constant 0 : i32
    %c0_i32_0 = arith.constant 0 : i32
    return %arg0, %c0_i32 : i32, i32
  }
  func.func @transform_2(%arg0: i32) -> (i32, i32) {
    %c0_i32 = arith.constant 0 : i32
    %c0_i32_0 = arith.constant 0 : i32
    %c0_i32_1 = arith.constant 0 : i32
    return %c0_i32, %c0_i32_0 : i32, i32
  }
  func.func @transform_3(%arg0: i32) -> (i32, i32) {
    %c0_i32 = arith.constant 0 : i32
    %c0_i32_0 = arith.constant 0 : i32
    %c0_i32_1 = arith.constant 0 : i32
    return %c0_i32, %c0_i32_0 : i32, i32
  }
  func.func @transform_4(%arg0: i32) -> (i32, i32) {
    %c0_i32 = arith.constant 0 : i32
    %c0_i32_0 = arith.constant 0 : i32
    %c0_i32_1 = arith.constant 0 : i32
    return %c0_i32, %c0_i32_0 : i32, i32
  }
  func.func @transform_5(%arg0: i32) -> (i32, i32) {
    %c0_i32 = arith.constant 0 : i32
    %c0_i32_0 = arith.constant 0 : i32
    %c0_i32_1 = arith.constant 0 : i32
    return %c0_i32, %c0_i32_0 : i32, i32
  }
  func.func @transform_6(%arg0: i32) -> (i32, i32) {
    %c0_i32 = arith.constant 0 : i32
    %c0_i32_0 = arith.constant 0 : i32
    %c0_i32_1 = arith.constant 0 : i32
    return %c0_i32, %c0_i32_0 : i32, i32
  }
  func.func @transform_7(%arg0: i32) -> (i32, i32) {
    %c0_i32 = arith.constant 0 : i32
    %c0_i32_0 = arith.constant 0 : i32
    return %arg0, %c0_i32 : i32, i32
  }
}

</mosaic_0001>

<llo_original>
// kernel: tpu_custom_call.1
$region0: #{tpu_custom_call.1}
  #allocation0 [shape = 'u32[]', space=smem, size = 0x4, offset = 0x4, fixed_abs, tag = 'smem constant byte address 0x4 - core index']
  #allocation1 [shape = 'u32[72,128]{1,0:T(1,128)}', space=vmem, size = 0x9000, scoped, tag = 'internal scratch']
  %s0 = inlined_call_operand.hbm [shape: f32[2,20], index: 0, kind: input, shape index: {}]
  %s1 = inlined_call_operand.hbm [shape: f32[2,12], index: 1, kind: input, shape index: {}]
  %s2 = inlined_call_operand.hbm [shape: bf16[20,256], index: 2, kind: input, shape index: {}]
  %s3 = inlined_call_operand.hbm [shape: bf16[12,256], index: 3, kind: input, shape index: {}]
  %s4 = inlined_call_operand.vmem [shape: f32[1,256], index: 4, kind: input, shape index: {}]
  %s5 = inlined_call_operand.hbm [shape: bf16[256,128], index: 5, kind: input, shape index: {}]
  %s6 = inlined_call_operand.vmem [shape: f32[1,128], index: 6, kind: input, shape index: {}]
  %s7 = inlined_call_operand.hbm [shape: f32[2,128], index: 7, kind: output, shape index: {}]
  %s8 = sld [smem:[#allocation0]]
  $region58: #{tpu_custom_call.1} parent=0
    _
  %s10 = ssub.s32 1, %s8
  %s11 = scalar_select 0, %s10, %s8
  $region1: #{tpu_custom_call.1} parent=0
    #allocation2 [shape = 'u8[8192]{0}', space=vmem, size = 0x2000, scoped, tag = 'input window, operand 0, single buffered']
    #allocation3 [shape = 's32[1]{0}', space=sflag, size = 0x4, scoped, tag = 'scoped memory for tpu_custom_call.1']
    #allocation4 [shape = 's32[1]{0}', space=sflag, size = 0x4, scoped, tag = 'scoped memory for tpu_custom_call.1']
    #allocation5 [shape = 'u8[8192]{0}', space=vmem, size = 0x2000, scoped, tag = 'input window, operand 1, single buffered']
    #allocation6 [shape = 's32[1]{0}', space=sflag, size = 0x4, scoped, tag = 'scoped memory for tpu_custom_call.1']
    #allocation7 [shape = 'u8[12288]{0}', space=vmem, size = 0x3000, scoped, tag = 'input window, operand 2, single buffered']
    #allocation8 [shape = 'u8[8192]{0}', space=vmem, size = 0x2000, scoped, tag = 'input window, operand 3, single buffered']
    #allocation9 [shape = 's32[1]{0}', space=sflag, size = 0x4, scoped, tag = 'scoped memory for tpu_custom_call.1']
    #allocation10 [shape = 'u8[65536]{0}', space=vmem, size = 0x10000, scoped, tag = 'input window, operand 5, single buffered']
    #allocation11 [shape = 'u8[8192]{0}', space=vmem, size = 0x2000, scoped, tag = 'output window, operand 0, single buffered']
    %12 = vsyncpa [#allocation3], 0
    %13 = vsyncpa [#allocation6], 0
    %14 = vsyncpa [#allocation9], 0
    %15 = vsyncpa [#allocation4], 0
    // Predicated region
    $region2: #{tpu_custom_call.1} parent=1 // pred_check
      _
    $region3: #{tpu_custom_call.1} parent=1 // pred_check_branch
      %17 = sbr.rel (0) target = $region5
    $region4: #{tpu_custom_call.1} parent=1 // pred_region
      %19 = vsyncadd [#allocation3], 224
      %s20 = sshll.u32 %s0, 4
      %s21 = int_to_ptr.hbm [resolvable:$true] %s20
      %s22 = sshll.u32 [#allocation2], 4
      %s23 = int_to_ptr.vmem [resolvable:$true] %s22
      %28 = dma.hbm_to_vmem [thread:$0]  %s21, 32, %s23, [#allocation3], 32, 32, 2
    $region5: #{tpu_custom_call.1} parent=1 // pred_fallthru
      _
    // Predicated region
    $region6: #{tpu_custom_call.1} parent=1 // pred_check
      _
    $region7: #{tpu_custom_call.1} parent=1 // pred_check_branch
      %30 = sbr.rel (0) target = $region9
    $region8: #{tpu_custom_call.1} parent=1 // pred_region
      %32 = vsyncadd [#allocation6], 224
      %s33 = sshll.u32 %s1, 4
      %s34 = int_to_ptr.hbm [resolvable:$true] %s33
      %s35 = sshll.u32 [#allocation5], 4
      %s36 = int_to_ptr.vmem [resolvable:$true] %s35
      %41 = dma.hbm_to_vmem [thread:$0]  %s34, 32, %s36, [#allocation6], 32, 32, 2
    $region9: #{tpu_custom_call.1} parent=1 // pred_fallthru
      _
    // Predicated region
    $region10: #{tpu_custom_call.1} parent=1 // pred_check
      _
    $region11: #{tpu_custom_call.1} parent=1 // pred_check_branch
      %43 = sbr.rel (0) target = $region13
    $region12: #{tpu_custom_call.1} parent=1 // pred_region
      %45 = vsyncadd [#allocation6], 0
      %s46 = sshll.u32 %s2, 4
      %s47 = int_to_ptr.hbm [resolvable:$true] %s46
      %s48 = sshll.u32 [#allocation7], 4
      %s49 = int_to_ptr.vmem [resolvable:$true] %s48
      %54 = dma.hbm_to_vmem [thread:$0]  %s47, 384, %s49, [#allocation6], 128, 128, 8
    $region13: #{tpu_custom_call.1} parent=1 // pred_fallthru
      _
    // Predicated region
    $region14: #{tpu_custom_call.1} parent=1 // pred_check
      _
    $region15: #{tpu_custom_call.1} parent=1 // pred_check_branch
      %56 = sbr.rel (0) target = $region17
    $region16: #{tpu_custom_call.1} parent=1 // pred_region
      %58 = vsyncadd [#allocation9], 0
      %s59 = sshll.u32 %s3, 4
      %s60 = int_to_ptr.hbm [resolvable:$true] %s59
      %s61 = sshll.u32 [#allocation8], 4
      %s62 = int_to_ptr.vmem [resolvable:$true] %s61
      %67 = dma.hbm_to_vmem [thread:$0]  %s60, 256, %s62, [#allocation9], 128, 128, 8
    $region17: #{tpu_custom_call.1} parent=1 // pred_fallthru
      _
    // Predicated region
    $region18: #{tpu_custom_call.1} parent=1 // pred_check
      _
    $region19: #{tpu_custom_call.1} parent=1 // pred_check_branch
      %69 = sbr.rel (0) target = $region21
    $region20: #{tpu_custom_call.1} parent=1 // pred_region
      _
    $region21: #{tpu_custom_call.1} parent=1 // pred_fallthru
      _
    // Predicated region
    $region22: #{tpu_custom_call.1} parent=1 // pred_check
      _
    $region23: #{tpu_custom_call.1} parent=1 // pred_check_branch
      %71 = sbr.rel (0) target = $region25
    $region24: #{tpu_custom_call.1} parent=1 // pred_region
      %73 = vsyncadd [#allocation9], 0
      %s74 = sshll.u32 %s5, 4
      %s75 = int_to_ptr.hbm [resolvable:$true] %s74
      %s76 = sshll.u32 [#allocation10], 4
      %s77 = int_to_ptr.vmem [resolvable:$true] %s76
      %82 = dma.hbm_to_vmem [thread:$0]  %s75, 2048, %s77, [#allocation9], 64, 64, 4
    $region25: #{tpu_custom_call.1} parent=1 // pred_fallthru
      _
    // Predicated region
    $region26: #{tpu_custom_call.1} parent=1 // pred_check
      _
    $region27: #{tpu_custom_call.1} parent=1 // pred_check_branch
      %84 = sbr.rel (0) target = $region29
    $region28: #{tpu_custom_call.1} parent=1 // pred_region
      _
    $region29: #{tpu_custom_call.1} parent=1 // pred_fallthru
      _
    // Predicated region
    $region30: #{tpu_custom_call.1} parent=1 // pred_check
      _
    $region31: #{tpu_custom_call.1} parent=1 // pred_check_branch
      %86 = sbr.rel (0) target = $region33
    $region32: #{tpu_custom_call.1} parent=1 // pred_region
      %88 = dma.done [#allocation3], 256
    $region33: #{tpu_custom_call.1} parent=1 // pred_fallthru
      _
    // Predicated region
    $region34: #{tpu_custom_call.1} parent=1 // pred_check
      _
    $region35: #{tpu_custom_call.1} parent=1 // pred_check_branch
      %90 = sbr.rel (0) target = $region37
    $region36: #{tpu_custom_call.1} parent=1 // pred_region
      %92 = dma.done [#allocation6], 256
    $region37: #{tpu_custom_call.1} parent=1 // pred_fallthru
      _
    // Predicated region
    $region38: #{tpu_custom_call.1} parent=1 // pred_check
      _
    $region39: #{tpu_custom_call.1} parent=1 // pred_check_branch
      %94 = sbr.rel (0) target = $region41
    $region40: #{tpu_custom_call.1} parent=1 // pred_region
      %96 = dma.done [#allocation6], 384
    $region41: #{tpu_custom_call.1} parent=1 // pred_fallthru
      _
    // Predicated region
    $region42: #{tpu_custom_call.1} parent=1 // pred_check
      _
    $region43: #{tpu_custom_call.1} parent=1 // pred_check_branch
      %98 = sbr.rel (0) target = $region45
    $region44: #{tpu_custom_call.1} parent=1 // pred_region
      %100 = dma.done [#allocation9], 256
    $region45: #{tpu_custom_call.1} parent=1 // pred_fallthru
      _
    // Predicated region
    $region46: #{tpu_custom_call.1} parent=1 // pred_check
      _
    $region47: #{tpu_custom_call.1} parent=1 // pred_check_branch
      %102 = sbr.rel (0) target = $region49
    $region48: #{tpu_custom_call.1} parent=1 // pred_region
      %104 = dma.done [#allocation9], 2048
    $region49: #{tpu_custom_call.1} parent=1 // pred_fallthru
      _
    %v106 = vld [vmem:[#allocation2] sm:$0xff]
    %v107 = vld [vmem:[#allocation2 + $0x8] sm:$0xff]
    %v108 = vpack.c.bf16 %v107, %v106
    %v109 = vld [vmem:[#allocation5] sm:$0xff]
    %v110 = vld [vmem:[#allocation5 + $0x8] sm:$0xff]
    %v111 = vpack.c.bf16 %v110, %v109
    %v112 = vld [vmem:[#allocation7] sm:$0xff]
    %v113 = vld [vmem:[#allocation7 + $0x8] sm:$0xff]
    %v114 = vld [vmem:[#allocation7 + $0x10] sm:$0x33]
    %v115 = vld [vmem:[#allocation8] sm:$0xff]
    %v116 = vld [vmem:[#allocation8 + $0x8] sm:$0x33]
    %v119 = vunpack.c.l.b16 %v115
    %v120 = vunpack.c.h.b16 %v115
    %v121 = vunpack.c.l.b16 %v116
    %v122 = vunpack.c.h.b16 %v116
    %v123 = vpack.c.b16 %v121, %v119
    %v124 = vpack.c.b16 %v122, %v120
    %vm125 = vcmask 97280
    %v127 = vsel %vm125, %v111, 0
    %vm129 = vcmask 1045504
    %v131 = vsel %vm129, %v123, 0
    %v134 = vsel %vm129, %v124, 0
    %136 = vmatpush.bf16.msra.mxu0 0
    %137 = vmatpush.bf16.msra.mxu0 0
    %138 = vmatpush.bf16.msra.mxu0 0
    %139 = vmatpush.bf16.msra.mxu0 0
    %140 = vmatpush.bf16.msra.mxu0 0
    %141 = vmatpush.bf16.msra.mxu0 0
    %142 = vmatpush.bf16.msra.mxu0 0
    %143 = vmatpush.bf16.msra.mxu0 %v131
    %144 = vmatmul.bf16.gmra.mxu0 %v127
    %v145 = vpop.f32.mrf.mxu0
    %v146 = vadd.f32 0.0, %v145
    %v147 = vpop.f32.mrf.mxu0
    %v148 = vadd.f32 0.0, %v147
    %149 = vdwg.mxu0
    %150 = vmatpush.bf16.msra.mxu0 0
    %151 = vmatpush.bf16.msra.mxu0 0
    %152 = vmatpush.bf16.msra.mxu0 0
    %153 = vmatpush.bf16.msra.mxu0 0
    %154 = vmatpush.bf16.msra.mxu0 0
    %155 = vmatpush.bf16.msra.mxu0 0
    %156 = vmatpush.bf16.msra.mxu0 0
    %157 = vmatpush.bf16.msra.mxu0 %v134
    %158 = vmatmul.bf16.gmra.mxu0 %v127
    %v159 = vpop.f32.mrf.mxu0
    %v160 = vadd.f32 0.0, %v159
    %v161 = vpop.f32.mrf.mxu0
    %v162 = vadd.f32 0.0, %v161
    %163 = vdwg.mxu0
    %v167 = vunpack.c.l.b16 %v112
    %v168 = vunpack.c.h.b16 %v112
    %v169 = vunpack.c.l.b16 %v113
    %v170 = vunpack.c.h.b16 %v113
    %v171 = vunpack.c.l.b16 %v114
    %v172 = vunpack.c.h.b16 %v114
    %v173 = vpack.c.b16 %v169, %v167
    %v174 = vpack.c.b16 %v170, %v168
    %v175 = vpack.c.b16 %v171, %v171
    %v176 = vpack.c.b16 %v172, %v172
    %vm179 = vcmask 162816
    %v181 = vsel %vm179, %v108, 0
    %vm183 = vcmask 1041408
    %v185 = vsel %vm183, %v175, 0
    %v188 = vsel %vm183, %v176, 0
    %190 = vmatpush.bf16.msra.mxu0 0
    %191 = vmatpush.bf16.msra.mxu0 0
    %192 = vmatpush.bf16.msra.mxu0 0
    %193 = vmatpush.bf16.msra.mxu0 0
    %194 = vmatpush.bf16.msra.mxu0 0
    %195 = vmatpush.bf16.msra.mxu0 0
    %196 = vmatpush.bf16.msra.mxu0 %v185
    %197 = vmatpush.bf16.msra.mxu0 %v173
    %198 = vmatmul.bf16.gmra.mxu0 %v181
    %v199 = vpop.f32.mrf.mxu0
    %v200 = vadd.f32 %v146, %v199
    %v201 = vpop.f32.mrf.mxu0
    %v202 = vadd.f32 %v148, %v201
    %203 = vdwg.mxu0
    %204 = vmatpush.bf16.msra.mxu0 0
    %205 = vmatpush.bf16.msra.mxu0 0
    %206 = vmatpush.bf16.msra.mxu0 0
    %207 = vmatpush.bf16.msra.mxu0 0
    %208 = vmatpush.bf16.msra.mxu0 0
    %209 = vmatpush.bf16.msra.mxu0 0
    %210 = vmatpush.bf16.msra.mxu0 %v188
    %211 = vmatpush.bf16.msra.mxu0 %v174
    %212 = vmatmul.bf16.gmra.mxu0 %v181
    %v213 = vpop.f32.mrf.mxu0
    %v214 = vadd.f32 %v160, %v213
    %v215 = vpop.f32.mrf.mxu0
    %v216 = vadd.f32 %v162, %v215
    %217 = vdwg.mxu0
    %v218 = vld [vmem:[%s4] sm:$0x3]
    %v220 = vperm.slane %v218, 0
    %v221 = vperm.slane %v218, 1
    %v224 = vadd.f32 %v200, %v220
    %v225 = vadd.f32 %v214, %v221
    %v226 = vadd.f32 %v202, %v220
    %v227 = vadd.f32 %v216, %v221
    %v228 = vmax.f32 %v224, 0.0
    %v229 = vmax.f32 %v225, 0.0
    %v230 = vmax.f32 %v226, 0.0
    %v231 = vmax.f32 %v227, 0.0
    %v232 = vpack.c.bf16 %v230, %v228
    %v233 = vpack.c.bf16 %v231, %v229
    %v234 = vld [vmem:[#allocation10] sm:$0xf]
    %v235 = vld [vmem:[#allocation10 + $0x4] sm:$0xf]
    %v236 = vld [vmem:[#allocation10 + $0x8] sm:$0xf]
    %v237 = vld [vmem:[#allocation10 + $0xc] sm:$0xf]
    %v238 = vld [vmem:[#allocation10 + $0x10] sm:$0xf]
    %v239 = vld [vmem:[#allocation10 + $0x14] sm:$0xf]
    %v240 = vld [vmem:[#allocation10 + $0x18] sm:$0xf]
    %v241 = vld [vmem:[#allocation10 + $0x1c] sm:$0xf]
    %v242 = vld [vmem:[#allocation10 + $0x20] sm:$0xf]
    %v243 = vld [vmem:[#allocation10 + $0x24] sm:$0xf]
    %v244 = vld [vmem:[#allocation10 + $0x28] sm:$0xf]
    %v245 = vld [vmem:[#allocation10 + $0x2c] sm:$0xf]
    %v246 = vld [vmem:[#allocation10 + $0x30] sm:$0xf]
    %v247 = vld [vmem:[#allocation10 + $0x34] sm:$0xf]
    %v248 = vld [vmem:[#allocation10 + $0x38] sm:$0xf]
    %v249 = vld [vmem:[#allocation10 + $0x3c] sm:$0xf]
    %v250 = vld [vmem:[#allocation10 + $0x40] sm:$0xf]
    %v251 = vld [vmem:[#allocation10 + $0x44] sm:$0xf]
    %v252 = vld [vmem:[#allocation10 + $0x48] sm:$0xf]
    %v253 = vld [vmem:[#allocation10 + $0x4c] sm:$0xf]
    %v254 = vld [vmem:[#allocation10 + $0x50] sm:$0xf]
    %v255 = vld [vmem:[#allocation10 + $0x54] sm:$0xf]
    %v256 = vld [vmem:[#allocation10 + $0x58] sm:$0xf]
    %v257 = vld [vmem:[#allocation10 + $0x5c] sm:$0xf]
    %v258 = vld [vmem:[#allocation10 + $0x60] sm:$0xf]
    %v259 = vld [vmem:[#allocation10 + $0x64] sm:$0xf]
    %v260 = vld [vmem:[#allocation10 + $0x68] sm:$0xf]
    %v261 = vld [vmem:[#allocation10 + $0x6c] sm:$0xf]
    %v262 = vld [vmem:[#allocation10 + $0x70] sm:$0xf]
    %v263 = vld [vmem:[#allocation10 + $0x74] sm:$0xf]
    %v264 = vld [vmem:[#allocation10 + $0x78] sm:$0xf]
    %v265 = vld [vmem:[#allocation10 + $0x7c] sm:$0xf]
    %v266 = vld [vmem:[%s6] sm:$0x1]
    %v268 = vperm.slane %v266, 0
    %v302 = vunpack.c.l.b16 %v234
    %v303 = vunpack.c.l.b16 %v235
    %v304 = vunpack.c.l.b16 %v236
    %v305 = vunpack.c.l.b16 %v237
    %v306 = vunpack.c.l.b16 %v238
    %v307 = vunpack.c.l.b16 %v239
    %v308 = vunpack.c.l.b16 %v240
    %v309 = vunpack.c.l.b16 %v241
    %v310 = vunpack.c.l.b16 %v242
    %v311 = vunpack.c.l.b16 %v243
    %v312 = vunpack.c.l.b16 %v244
    %v313 = vunpack.c.l.b16 %v245
    %v314 = vunpack.c.l.b16 %v246
    %v315 = vunpack.c.l.b16 %v247
    %v316 = vunpack.c.l.b16 %v248
    %v317 = vunpack.c.l.b16 %v249
    %v318 = vunpack.c.l.b16 %v250
    %v319 = vunpack.c.l.b16 %v251
    %v320 = vunpack.c.l.b16 %v252
    %v321 = vunpack.c.l.b16 %v253
    %v322 = vunpack.c.l.b16 %v254
    %v323 = vunpack.c.l.b16 %v255
    %v324 = vunpack.c.l.b16 %v256
    %v325 = vunpack.c.l.b16 %v257
    %v326 = vunpack.c.l.b16 %v258
    %v327 = vunpack.c.l.b16 %v259
    %v328 = vunpack.c.l.b16 %v260
    %v329 = vunpack.c.l.b16 %v261
    %v330 = vunpack.c.l.b16 %v262
    %v331 = vunpack.c.l.b16 %v263
    %v332 = vunpack.c.l.b16 %v264
    %v333 = vunpack.c.l.b16 %v265
    %v334 = vpack.c.b16 %v303, %v302
    %v335 = vpack.c.b16 %v305, %v304
    %v336 = vpack.c.b16 %v307, %v306
    %v337 = vpack.c.b16 %v309, %v308
    %v338 = vpack.c.b16 %v311, %v310
    %v339 = vpack.c.b16 %v313, %v312
    %v340 = vpack.c.b16 %v315, %v314
    %v341 = vpack.c.b16 %v317, %v316
    %v342 = vpack.c.b16 %v319, %v318
    %v343 = vpack.c.b16 %v321, %v320
    %v344 = vpack.c.b16 %v323, %v322
    %v345 = vpack.c.b16 %v325, %v324
    %v346 = vpack.c.b16 %v327, %v326
    %v347 = vpack.c.b16 %v329, %v328
    %v348 = vpack.c.b16 %v331, %v330
    %v349 = vpack.c.b16 %v333, %v332
    %366 = vmatpush.bf16.msra.mxu0 %v341
    %367 = vmatpush.bf16.msra.mxu0 %v340
    %368 = vmatpush.bf16.msra.mxu0 %v339
    %369 = vmatpush.bf16.msra.mxu0 %v338
    %370 = vmatpush.bf16.msra.mxu0 %v337
    %371 = vmatpush.bf16.msra.mxu0 %v336
    %372 = vmatpush.bf16.msra.mxu0 %v335
    %373 = vmatpush.bf16.msra.mxu0 %v334
    %374 = vmatmul.bf16.gmra.mxu0 %v232
    %v375 = vpop.f32.mrf.mxu0
    %v376 = vadd.f32 %v268, %v375
    %v377 = vpop.f32.mrf.mxu0
    %v378 = vadd.f32 %v268, %v377
    %379 = vdwg.mxu0
    %380 = vmatpush.bf16.msra.mxu0 %v349
    %381 = vmatpush.bf16.msra.mxu0 %v348
    %382 = vmatpush.bf16.msra.mxu0 %v347
    %383 = vmatpush.bf16.msra.mxu0 %v346
    %384 = vmatpush.bf16.msra.mxu0 %v345
    %385 = vmatpush.bf16.msra.mxu0 %v344
    %386 = vmatpush.bf16.msra.mxu0 %v343
    %387 = vmatpush.bf16.msra.mxu0 %v342
    %388 = vmatmul.bf16.gmra.mxu0 %v233
    %v389 = vpop.f32.mrf.mxu0
    %v390 = vadd.f32 %v376, %v389
    %v391 = vpop.f32.mrf.mxu0
    %v392 = vadd.f32 %v378, %v391
    %393 = vdwg.mxu0
    %394 = vst [vmem:[#allocation11] sm:$0xff] %v390
    %395 = vst [vmem:[#allocation11 + $0x8] sm:$0xff] %v392
    // Predicated region
    $region50: #{tpu_custom_call.1} parent=1 // pred_check
      _
    $region51: #{tpu_custom_call.1} parent=1 // pred_check_branch
      %397 = sbr.rel (0) target = $region53
    $region52: #{tpu_custom_call.1} parent=1 // pred_region
      %399 = vsyncadd [#allocation4], 224
      %s400 = sshll.u32 [#allocation11], 4
      %s401 = int_to_ptr.vmem [resolvable:$true] %s400
      %s402 = sshll.u32 %s7, 4
      %s403 = int_to_ptr.hbm [resolvable:$true] %s402
      %408 = dma.vmem_to_hbm [thread:$0]  %s401, 32, %s403, [#allocation4], 32, 32, 2
    $region53: #{tpu_custom_call.1} parent=1 // pred_fallthru
      _
    // Predicated region
    $region54: #{tpu_custom_call.1} parent=1 // pred_check
      _
    $region55: #{tpu_custom_call.1} parent=1 // pred_check_branch
      %410 = sbr.rel (0) target = $region57
    $region56: #{tpu_custom_call.1} parent=1 // pred_region
      %412 = dma.done [#allocation4], 256
    $region57: #{tpu_custom_call.1} parent=1 // pred_fallthru
      _
    %413 = vsyncpa [#allocation3], 1
    %414 = vsyncpa [#allocation6], 1
    %415 = vsyncpa [#allocation9], 1
    %416 = vsyncpa [#allocation4], 1

</llo_original>
